<compile_context>
chip_gen: v6e
topology: v6e:2x2x1
jax: 0.10.0
libtpu: 0.0.40
codegen_flags: <defaults>
</compile_context>

<pallas_src>
import functools

import jax
import jax.numpy as jnp
from jax.experimental import pallas as pl
from jax.experimental.pallas import tpu as pltpu

_D = 128  # padded feature / lane width


def _round_up(x, m):
    return ((x + m - 1) // m) * m


def simplenet_kernel(x_ref, w_ref, b_ref, out_ref, *, num_actions):
    A = num_actions

    x = x_ref[...]                      # (TB, 128)
    b = b_ref[...]                      # (3, 128)

    # stage 1: linear1
    h1 = jnp.dot(x, w_ref[0], preferred_element_type=jnp.float32) + b[0:1, :]

    # stage 2 (fused): lanes [0:d) = relu(action_fc), lanes [d:2d) = relu(state_value_fc)
    h2 = jnp.dot(h1, w_ref[1], preferred_element_type=jnp.float32) + b[1:2, :]
    h2 = jnp.maximum(h2, 0.0)

    # stage 3 (fused, block-diagonal): lanes [0:A) = action_value, lane A = state_value
    h3 = jnp.dot(h2, w_ref[2], preferred_element_type=jnp.float32) + b[2:3, :]

    lane = jax.lax.broadcasted_iota(jnp.int32, h3.shape, 1)
    act_mask = lane < A

    av = jnp.where(act_mask, h3, 0.0)
    av_mean = jnp.sum(av, axis=1, keepdims=True) * (1.0 / A)
    sv = jnp.sum(jnp.where(lane == A, h3, 0.0), axis=1, keepdims=True)

    out = sv + (av - av_mean)
    out_ref[...] = jnp.where(act_mask, out, 0.0).astype(out_ref.dtype)


def _pack_params(params, num_actions):
    """Pack the 5 PyTorch-layout (out,in) Linear layers into padded fused slabs."""
    A = num_actions
    d = 2 + A
    assert 2 * d <= _D and A + 1 <= _D, "num_actions too large for 128-lane packing"

    w1, b1 = params["linear1"]
    waf, baf = params["action_fc"]
    wsf, bsf = params["state_value_fc"]
    wav, bav = params["action_value"]
    wsv, bsv = params["state_value"]

    W = jnp.zeros((3, _D, _D), jnp.float32)
    Bv = jnp.zeros((3, _D), jnp.float32)

    # stage 1: linear1
    W = W.at[0, :d, :d].set(w1.T)
    Bv = Bv.at[0, :d].set(b1)

    # stage 2: [action_fc | state_value_fc]
    W = W.at[1, :d, :d].set(waf.T)
    W = W.at[1, :d, d:2 * d].set(wsf.T)
    Bv = Bv.at[1, :d].set(baf)
    Bv = Bv.at[1, d:2 * d].set(bsf)

    # stage 3: block-diagonal [action_value ; state_value]
    W = W.at[2, :d, :A].set(wav.T)
    W = W.at[2, d:2 * d, A:A + 1].set(wsv.T)
    Bv = Bv.at[2, :A].set(bav)
    Bv = Bv.at[2, A].set(bsv[0])

    return W, Bv


def simplenet_forward(x, params, *, block_batch=1024):
    """x: (B, 2+num_actions) float32; params: dict of (W, b) in PyTorch layout."""
    A = params["action_value"][0].shape[0]
    d = 2 + A
    B = x.shape[0]

    # Batch tile: multiple of 8 sublanes, capped so 2x-double-buffered x/out tiles
    # stay tiny (a 1024x128 f32 tile is 0.5 MiB) -- safe within v7x's 64 MiB VMEM.
    TB = min(block_batch, _round_up(max(B, 1), 8))
    B_pad = _round_up(B, TB)
    grid = (pl.cdiv(B_pad, TB),)

    x_pad = jnp.zeros((B_pad, _D), jnp.float32).at[:B, :d].set(x.astype(jnp.float32))
    W, Bv = _pack_params(params, A)

    cost = pl.CostEstimate(
        flops=2 * B_pad * _D * _D * 3,
        transcendentals=0,
        bytes_accessed=2 * B_pad * _D * 4 + (3 * _D * _D + 3 * _D) * 4,
    )

    out_pad = pl.pallas_call(
        functools.partial(simplenet_kernel, num_actions=A),
        out_shape=jax.ShapeDtypeStruct((B_pad, _D), jnp.float32),
        grid=grid,
        in_specs=[
            pl.BlockSpec((TB, _D), lambda i: (i, 0)),          # x tile (streamed)
            pl.BlockSpec((3, _D, _D), lambda i: (0, 0, 0)),    # packed weights (constant)
            pl.BlockSpec((3, _D), lambda i: (0, 0)),           # packed biases (constant)
        ],
        out_specs=pl.BlockSpec((TB, _D), lambda i: (i, 0)),
        compiler_params=pltpu.CompilerParams(
            dimension_semantics=("parallel",),
            vmem_limit_bytes=64 * 1024 * 1024,
        ),
        cost_estimate=cost,
    )(x_pad, W, Bv)

    return out_pad[:B, :A]


def init_params(key, num_actions):
    """Deterministic init matching the PyTorch module: N(0, 0.1) weights, 0 bias."""
    d = 2 + num_actions
    shapes = {
        "linear1": (d, d),
        "state_value_fc": (d, d),
        "action_fc": (d, d),
        "action_value": (num_actions, d),
        "state_value": (1, d),
    }
    params = {}
    for name, (out_f, in_f) in shapes.items():
        key, sub = jax.random.split(key)
        w = 0.1 * jax.random.normal(sub, (out_f, in_f), dtype=jnp.float32)
        b = jnp.zeros((out_f,), dtype=jnp.float32)
        params[name] = (w, b)
    return params


def reference_forward(x, params):
    """Pure-JAX reference mirroring the PyTorch forward."""
    def lin(name, v):
        w, b = params[name]
        return v @ w.T + b

    h = lin("linear1", x)
    afc = jax.nn.relu(lin("action_fc", h))
    av = lin("action_value", afc)
    sfc = jax.nn.relu(lin("state_value_fc", h))
    sv = lin("state_value", sfc)
    return sv + (av - jnp.mean(av, axis=1, keepdims=True))


if __name__ == "__main__":
    num_actions = 4
    key = jax.random.PRNGKey(0)
    kp, kx1, kx2 = jax.random.split(key, 3)
    params = init_params(kp, num_actions)

    # Small batch: single grid step.
    x1 = jax.random.normal(kx1, (8, 2 + num_actions), dtype=jnp.float32)
    out1 = jax.block_until_ready(simplenet_forward(x1, params))
    ref1 = reference_forward(x1, params)
    assert out1.shape == (8, num_actions)
    assert jnp.allclose(out1, ref1, atol=1e-5, rtol=1e-5), "mismatch vs reference (B=8)"

    # Non-multiple-of-tile batch with a multi-step pipelined grid.
    x2 = jax.random.normal(kx2, (300, 2 + num_actions), dtype=jnp.float32)
    out2 = jax.block_until_ready(simplenet_forward(x2, params, block_batch=128))
    ref2 = reference_forward(x2, params)
    assert out2.shape == (300, num_actions)
    assert jnp.allclose(out2, ref2, atol=1e-5, rtol=1e-5), "mismatch vs reference (B=300)"

    print("KERNEL_OK")
</pallas_src>

<mosaic_0001>
module attributes {stable_mosaic.version = 11 : i64} {
  func.func @simplenet_kernel(%arg0: i32, %arg1: memref<8x128xf32, #tpu.memory_space<vmem>>, %arg2: memref<3x128x128xf32, #tpu.memory_space<vmem>>, %arg3: memref<3x128xf32, #tpu.memory_space<vmem>>, %arg4: memref<8x128xf32, #tpu.memory_space<vmem>>) attributes {dimension_semantics = [#tpu.dimension_semantics<parallel>], iteration_bounds = array<i64: 1>, scalar_prefetch = 0 : i64, scratch_operands = 0 : i64, tpu.core_type = #tpu.core_type<tc>, window_params = [{transform_indices = @transform_0, window_bounds = array<i64: 8, 128>}, {pipeline_mode = #tpu.pipeline_mode<synchronous>, transform_indices = @transform_1, window_bounds = array<i64: 3, 128, 128>}, {pipeline_mode = #tpu.pipeline_mode<synchronous>, transform_indices = @transform_2, window_bounds = array<i64: 3, 128>}, {transform_indices = @transform_3, window_bounds = array<i64: 8, 128>}]} {
    %c0 = arith.constant 0 : index
    %c0_0 = arith.constant 0 : index
    %0 = vector.load %arg1[%c0, %c0_0] : memref<8x128xf32, #tpu.memory_space<vmem>>, vector<8x128xf32>
    %c0_1 = arith.constant 0 : index
    %c0_2 = arith.constant 0 : index
    %1 = vector.load %arg3[%c0_1, %c0_2] : memref<3x128xf32, #tpu.memory_space<vmem>>, vector<3x128xf32>
    %c0_3 = arith.constant 0 : index
    %c0_4 = arith.constant 0 : index
    %c0_5 = arith.constant 0 : index
    %2 = vector.load %arg2[%c0_3, %c0_4, %c0_5] : memref<3x128x128xf32, #tpu.memory_space<vmem>>, vector<1x128x128xf32>
    %3 = vector.shape_cast %2 : vector<1x128x128xf32> to vector<128x128xf32>
    %cst = arith.constant dense<0.000000e+00> : vector<8x128xf32>
    %4 = tpu.matmul %0, %3, %cst {dimension_numbers = #tpu.dot_dimension_numbers<[1], [0], [0], [1], [0, 0, 1, 1], [], []>} : vector<8x128xf32>, vector<128x128xf32>, vector<8x128xf32> -> vector<8x128xf32>
    %5 = vector.extract_strided_slice %1 {offsets = [0, 0], sizes = [1, 128], strides = [1, 1]} : vector<3x128xf32> to vector<1x128xf32>
    %6 = vector.broadcast %5 : vector<1x128xf32> to vector<8x128xf32>
    %7 = arith.addf %4, %6 : vector<8x128xf32>
    %c1 = arith.constant 1 : index
    %c0_6 = arith.constant 0 : index
    %c0_7 = arith.constant 0 : index
    %8 = vector.load %arg2[%c1, %c0_6, %c0_7] : memref<3x128x128xf32, #tpu.memory_space<vmem>>, vector<1x128x128xf32>
    %9 = vector.shape_cast %8 : vector<1x128x128xf32> to vector<128x128xf32>
    %cst_8 = arith.constant dense<0.000000e+00> : vector<8x128xf32>
    %10 = tpu.matmul %7, %9, %cst_8 {dimension_numbers = #tpu.dot_dimension_numbers<[1], [0], [0], [1], [0, 0, 1, 1], [], []>} : vector<8x128xf32>, vector<128x128xf32>, vector<8x128xf32> -> vector<8x128xf32>
    %11 = vector.extract_strided_slice %1 {offsets = [1, 0], sizes = [1, 128], strides = [1, 1]} : vector<3x128xf32> to vector<1x128xf32>
    %12 = vector.broadcast %11 : vector<1x128xf32> to vector<8x128xf32>
    %13 = arith.addf %10, %12 : vector<8x128xf32>
    %cst_9 = arith.constant 0.000000e+00 : f32
    %14 = vector.broadcast %cst_9 : f32 to vector<8x128xf32>
    %15 = arith.maximumf %13, %14 : vector<8x128xf32>
    %c2 = arith.constant 2 : index
    %c0_10 = arith.constant 0 : index
    %c0_11 = arith.constant 0 : index
    %16 = vector.load %arg2[%c2, %c0_10, %c0_11] : memref<3x128x128xf32, #tpu.memory_space<vmem>>, vector<1x128x128xf32>
    %17 = vector.shape_cast %16 : vector<1x128x128xf32> to vector<128x128xf32>
    %cst_12 = arith.constant dense<0.000000e+00> : vector<8x128xf32>
    %18 = tpu.matmul %15, %17, %cst_12 {dimension_numbers = #tpu.dot_dimension_numbers<[1], [0], [0], [1], [0, 0, 1, 1], [], []>} : vector<8x128xf32>, vector<128x128xf32>, vector<8x128xf32> -> vector<8x128xf32>
    %19 = vector.extract_strided_slice %1 {offsets = [2, 0], sizes = [1, 128], strides = [1, 1]} : vector<3x128xf32> to vector<1x128xf32>
    %20 = vector.broadcast %19 : vector<1x128xf32> to vector<8x128xf32>
    %21 = arith.addf %18, %20 : vector<8x128xf32>
    %22 = tpu.iota {dimensions = array<i32: 1>} : vector<8x128xi32>
    %c4_i32 = arith.constant 4 : i32
    %23 = vector.broadcast %c4_i32 : i32 to vector<8x128xi32>
    %24 = arith.cmpi slt, %22, %23 : vector<8x128xi32>
    %cst_13 = arith.constant 0.000000e+00 : f32
    %25 = vector.broadcast %cst_13 : f32 to vector<8x128xf32>
    %26 = arith.select %24, %21, %25 : vector<8x128xi1>, vector<8x128xf32>
    %cst_14 = arith.constant dense<0.000000e+00> : vector<8xf32>
    %27 = vector.multi_reduction <add>, %26, %cst_14 [1] : vector<8x128xf32> to vector<8xf32>
    %28 = vector.shape_cast %27 : vector<8xf32> to vector<8x1xf32>
    %cst_15 = arith.constant 2.500000e-01 : f32
    %29 = vector.broadcast %cst_15 : f32 to vector<8x1xf32>
    %30 = arith.mulf %28, %29 : vector<8x1xf32>
    %c4_i32_16 = arith.constant 4 : i32
    %31 = vector.broadcast %c4_i32_16 : i32 to vector<8x128xi32>
    %32 = arith.cmpi eq, %22, %31 : vector<8x128xi32>
    %cst_17 = arith.constant 0.000000e+00 : f32
    %33 = vector.broadcast %cst_17 : f32 to vector<8x128xf32>
    %34 = arith.select %32, %21, %33 : vector<8x128xi1>, vector<8x128xf32>
    %cst_18 = arith.constant dense<0.000000e+00> : vector<8xf32>
    %35 = vector.multi_reduction <add>, %34, %cst_18 [1] : vector<8x128xf32> to vector<8xf32>
    %36 = vector.shape_cast %35 : vector<8xf32> to vector<8x1xf32>
    %37 = vector.broadcast %30 : vector<8x1xf32> to vector<8x128xf32>
    %38 = arith.subf %26, %37 : vector<8x128xf32>
    %39 = vector.broadcast %36 : vector<8x1xf32> to vector<8x128xf32>
    %40 = arith.addf %39, %38 : vector<8x128xf32>
    %cst_19 = arith.constant 0.000000e+00 : f32
    %41 = vector.broadcast %cst_19 : f32 to vector<8x128xf32>
    %42 = arith.select %24, %40, %41 : vector<8x128xi1>, vector<8x128xf32>
    %c0_20 = arith.constant 0 : index
    %c0_21 = arith.constant 0 : index
    %43 = vector.load %arg4[%c0_20, %c0_21] : memref<8x128xf32, #tpu.memory_space<vmem>>, vector<8x128xf32>
    tpu.vector_store %arg4[%c0_20, %c0_21], %42 {strides = array<i32>} : memref<8x128xf32, #tpu.memory_space<vmem>>, vector<8x128xf32>,
    return
  }
  func.func @transform_0(%arg0: i32) -> (i32, i32) {
    %c0_i32 = arith.constant 0 : i32
    %c0_i32_0 = arith.constant 0 : i32
    return %arg0, %c0_i32 : i32, i32
  }
  func.func @transform_1(%arg0: i32) -> (i32, i32, i32) {
    %c0_i32 = arith.constant 0 : i32
    %c0_i32_0 = arith.constant 0 : i32
    %c0_i32_1 = arith.constant 0 : i32
    %c0_i32_2 = arith.constant 0 : i32
    return %c0_i32, %c0_i32_0, %c0_i32_1 : i32, i32, i32
  }
  func.func @transform_2(%arg0: i32) -> (i32, i32) {
    %c0_i32 = arith.constant 0 : i32
    %c0_i32_0 = arith.constant 0 : i32
    %c0_i32_1 = arith.constant 0 : i32
    return %c0_i32, %c0_i32_0 : i32, i32
  }
  func.func @transform_3(%arg0: i32) -> (i32, i32) {
    %c0_i32 = arith.constant 0 : i32
    %c0_i32_0 = arith.constant 0 : i32
    return %arg0, %c0_i32 : i32, i32
  }
}

</mosaic_0001>

<llo_original>
// kernel: tpu_custom_call.1
$region0: #{tpu_custom_call.1}
  #allocation0 [shape = 'u32[]', space=smem, size = 0x4, offset = 0x4, fixed_abs, tag = 'smem constant byte address 0x4 - core index']
  #allocation1 [shape = 'u32[144,128]{1,0:T(1,128)}', space=vmem, size = 0x12000, scoped, tag = 'internal scratch']
  %s0 = inlined_call_operand.hbm [shape: f32[8,128], index: 0, kind: input, shape index: {}]
  %s1 = inlined_call_operand.hbm [shape: f32[3,128,128], index: 1, kind: input, shape index: {}]
  %s2 = inlined_call_operand.hbm [shape: f32[3,128], index: 2, kind: input, shape index: {}]
  %s3 = inlined_call_operand.hbm [shape: f32[8,128], index: 3, kind: output, shape index: {}]
  %s4 = sld [smem:[#allocation0]]
  $region34: #{tpu_custom_call.1} parent=0
    _
  %s6 = ssub.s32 1, %s4
  %s7 = scalar_select 0, %s6, %s4
  $region1: #{tpu_custom_call.1} parent=0
    #allocation2 [shape = 'u8[4096]{0}', space=vmem, size = 0x1000, scoped, tag = 'input window, operand 0, single buffered']
    #allocation3 [shape = 's32[1]{0}', space=sflag, size = 0x4, scoped, tag = 'scoped memory for tpu_custom_call.1']
    #allocation4 [shape = 's32[1]{0}', space=sflag, size = 0x4, scoped, tag = 'scoped memory for tpu_custom_call.1']
    #allocation5 [shape = 'u8[196608]{0}', space=vmem, size = 0x30000, scoped, tag = 'input window, operand 1, single buffered']
    #allocation6 [shape = 's32[1]{0}', space=sflag, size = 0x4, scoped, tag = 'scoped memory for tpu_custom_call.1']
    #allocation7 [shape = 'u8[2048]{0}', space=vmem, size = 0x800, scoped, tag = 'input window, operand 2, single buffered']
    #allocation8 [shape = 'u8[4096]{0}', space=vmem, size = 0x1000, scoped, tag = 'output window, operand 0, single buffered']
    %8 = vsyncpa [#allocation3], 0
    %9 = vsyncpa [#allocation6], 0
    %10 = vsyncpa [#allocation4], 0
    // Predicated region
    $region2: #{tpu_custom_call.1} parent=1 // pred_check
      _
    $region3: #{tpu_custom_call.1} parent=1 // pred_check_branch
      %12 = sbr.rel (0) target = $region5
    $region4: #{tpu_custom_call.1} parent=1 // pred_region
      %s14 = ssub.s32 128, 128
      %15 = vsyncadd [#allocation3], %s14
      %s17 = sshll.u32 [#allocation2], 4
      %s18 = int_to_ptr.vmem [resolvable:$true] %s17
      %20 = dma.hbm_to_vmem [thread:$0]  %s0, 128, %s18, [#allocation3]
    $region5: #{tpu_custom_call.1} parent=1 // pred_fallthru
      _
    // Predicated region
    $region6: #{tpu_custom_call.1} parent=1 // pred_check
      _
    $region7: #{tpu_custom_call.1} parent=1 // pred_check_branch
      %22 = sbr.rel (0) target = $region9
    $region8: #{tpu_custom_call.1} parent=1 // pred_region
      %s24 = ssub.s32 6144, 6144
      %25 = vsyncadd [#allocation6], %s24
      %s26 = sshll.u32 [#allocation5], 4
      %s27 = int_to_ptr.vmem [resolvable:$true] %s26
      %32 = dma.hbm_to_vmem [thread:$0]  %s1, 6144, %s27, [#allocation6], 128, 128, 8
    $region9: #{tpu_custom_call.1} parent=1 // pred_fallthru
      _
    // Predicated region
    $region10: #{tpu_custom_call.1} parent=1 // pred_check
      _
    $region11: #{tpu_custom_call.1} parent=1 // pred_check_branch
      %34 = sbr.rel (0) target = $region13
    $region12: #{tpu_custom_call.1} parent=1 // pred_region
      %s36 = ssub.s32 64, 64
      %37 = vsyncadd [#allocation6], %s36
      %s39 = sshll.u32 [#allocation7], 4
      %s40 = int_to_ptr.vmem [resolvable:$true] %s39
      %42 = dma.hbm_to_vmem [thread:$0]  %s2, 64, %s40, [#allocation6]
    $region13: #{tpu_custom_call.1} parent=1 // pred_fallthru
      _
    // Predicated region
    $region14: #{tpu_custom_call.1} parent=1 // pred_check
      _
    $region15: #{tpu_custom_call.1} parent=1 // pred_check_branch
      %44 = sbr.rel (0) target = $region17
    $region16: #{tpu_custom_call.1} parent=1 // pred_region
      %45 = dma.done [#allocation3], 128
    $region17: #{tpu_custom_call.1} parent=1 // pred_fallthru
      _
    // Predicated region
    $region18: #{tpu_custom_call.1} parent=1 // pred_check
      _
    $region19: #{tpu_custom_call.1} parent=1 // pred_check_branch
      %47 = sbr.rel (0) target = $region21
    $region20: #{tpu_custom_call.1} parent=1 // pred_region
      %48 = dma.done [#allocation6], 6144
    $region21: #{tpu_custom_call.1} parent=1 // pred_fallthru
      _
    // Predicated region
    $region22: #{tpu_custom_call.1} parent=1 // pred_check
      _
    $region23: #{tpu_custom_call.1} parent=1 // pred_check_branch
      %50 = sbr.rel (0) target = $region25
    $region24: #{tpu_custom_call.1} parent=1 // pred_region
      %51 = dma.done [#allocation6], 64
    $region25: #{tpu_custom_call.1} parent=1 // pred_fallthru
      _
    %v52 = vld [vmem:[#allocation2] sm:$0xff]
    %v53 = vld [vmem:[#allocation7] sm:$0x7]
    %v54 = vld [vmem:[#allocation5] sm:$0xff]
    %v55 = vld [vmem:[#allocation5 + $0x8] sm:$0xff]
    %v56 = vld [vmem:[#allocation5 + $0x10] sm:$0xff]
    %v57 = vld [vmem:[#allocation5 + $0x18] sm:$0xff]
    %v58 = vld [vmem:[#allocation5 + $0x20] sm:$0xff]
    %v59 = vld [vmem:[#allocation5 + $0x28] sm:$0xff]
    %v60 = vld [vmem:[#allocation5 + $0x30] sm:$0xff]
    %v61 = vld [vmem:[#allocation5 + $0x38] sm:$0xff]
    %v62 = vld [vmem:[#allocation5 + $0x40] sm:$0xff]
    %v63 = vld [vmem:[#allocation5 + $0x48] sm:$0xff]
    %v64 = vld [vmem:[#allocation5 + $0x50] sm:$0xff]
    %v65 = vld [vmem:[#allocation5 + $0x58] sm:$0xff]
    %v66 = vld [vmem:[#allocation5 + $0x60] sm:$0xff]
    %v67 = vld [vmem:[#allocation5 + $0x68] sm:$0xff]
    %v68 = vld [vmem:[#allocation5 + $0x70] sm:$0xff]
    %v69 = vld [vmem:[#allocation5 + $0x78] sm:$0xff]
    %v70 = vlaneseq
    %v71 = vshrl.u32 %v70, 7
    %v72 = vsub.s32 0, %v71
    %v73 = vrot.slane %v53, %v72
    %74 = vmatprep.subr.mxu0 0.0
    %75 = vmatpush1.msra.mxu0 %v69
    %76 = vmatprep.subr.mxu0 0.0
    %77 = vmatpush1.msra.mxu0 %v68
    %78 = vmatprep.subr.mxu0 0.0
    %79 = vmatpush1.msra.mxu0 %v67
    %80 = vmatprep.subr.mxu0 0.0
    %81 = vmatpush1.msra.mxu0 %v66
    %82 = vmatprep.subr.mxu0 0.0
    %83 = vmatpush1.msra.mxu0 %v65
    %84 = vmatprep.subr.mxu0 0.0
    %85 = vmatpush1.msra.mxu0 %v64
    %86 = vmatprep.subr.mxu0 0.0
    %87 = vmatpush1.msra.mxu0 %v63
    %88 = vmatprep.subr.mxu0 0.0
    %89 = vmatpush1.msra.mxu0 %v62
    %90 = vmatprep.subr.mxu0 0.0
    %91 = vmatpush1.msra.mxu0 %v61
    %92 = vmatprep.subr.mxu0 0.0
    %93 = vmatpush1.msra.mxu0 %v60
    %94 = vmatprep.subr.mxu0 0.0
    %95 = vmatpush1.msra.mxu0 %v59
    %96 = vmatprep.subr.mxu0 0.0
    %97 = vmatpush1.msra.mxu0 %v58
    %98 = vmatprep.subr.mxu0 0.0
    %99 = vmatpush1.msra.mxu0 %v57
    %100 = vmatprep.subr.mxu0 0.0
    %101 = vmatpush1.msra.mxu0 %v56
    %102 = vmatprep.subr.mxu0 0.0
    %103 = vmatpush1.msra.mxu0 %v55
    %104 = vmatprep.subr.mxu0 0.0
    %105 = vmatpush1.msra.mxu0 %v54
    %106 = vmatprep.subr.mxu0 0.0
    %107 = vmatpush2.msra.mxu0 0.0
    %108 = vmatprep.subr.mxu0 0.0
    %109 = vmatpush2.msra.mxu0 0.0
    %110 = vmatprep.subr.mxu0 0.0
    %111 = vmatpush2.msra.mxu0 0.0
    %112 = vmatprep.subr.mxu0 0.0
    %113 = vmatpush2.msra.mxu0 0.0
    %114 = vmatprep.subr.mxu0 0.0
    %115 = vmatpush2.msra.mxu0 0.0
    %116 = vmatprep.subr.mxu0 0.0
    %117 = vmatpush2.msra.mxu0 0.0
    %118 = vmatprep.subr.mxu0 0.0
    %119 = vmatpush2.msra.mxu0 0.0
    %120 = vmatprep.subr.mxu0 0.0
    %121 = vmatpush2.msra.mxu0 0.0
    %122 = vmatprep.subr.mxu0 0.0
    %123 = vmatpush2.msra.mxu0 0.0
    %124 = vmatprep.subr.mxu0 0.0
    %125 = vmatpush2.msra.mxu0 0.0
    %126 = vmatprep.subr.mxu0 0.0
    %127 = vmatpush2.msra.mxu0 0.0
    %128 = vmatprep.subr.mxu0 0.0
    %129 = vmatpush2.msra.mxu0 0.0
    %130 = vmatprep.subr.mxu0 0.0
    %131 = vmatpush2.msra.mxu0 0.0
    %132 = vmatprep.subr.mxu0 0.0
    %133 = vmatpush2.msra.mxu0 0.0
    %134 = vmatprep.subr.mxu0 0.0
    %135 = vmatpush2.msra.mxu0 0.0
    %136 = vmatprep.subr.mxu0 0.0
    %137 = vmatpush2.msra.mxu0 0.0
    %138 = vmatprep.mubr.f32.mxu0 0.0
    %139 = vmatmul.mubr.f32.gmra.mxu0 %v52
    %v140 = vpop.f32.mrf.mxu0
    %v141 = vadd.f32 %v73, %v140
    %v142 = vpop.f32.mrf.mxu0
    %143 = vdwg.mxu0
    %s144 = scalar_lea.vmem [#allocation5], 128
    %v145 = vld [vmem:[%s144] sm:$0xff]
    %v146 = vld [vmem:[%s144 + $0x8] sm:$0xff]
    %v147 = vld [vmem:[%s144 + $0x10] sm:$0xff]
    %v148 = vld [vmem:[%s144 + $0x18] sm:$0xff]
    %v149 = vld [vmem:[%s144 + $0x20] sm:$0xff]
    %v150 = vld [vmem:[%s144 + $0x28] sm:$0xff]
    %v151 = vld [vmem:[%s144 + $0x30] sm:$0xff]
    %v152 = vld [vmem:[%s144 + $0x38] sm:$0xff]
    %v153 = vld [vmem:[%s144 + $0x40] sm:$0xff]
    %v154 = vld [vmem:[%s144 + $0x48] sm:$0xff]
    %v155 = vld [vmem:[%s144 + $0x50] sm:$0xff]
    %v156 = vld [vmem:[%s144 + $0x58] sm:$0xff]
    %v157 = vld [vmem:[%s144 + $0x60] sm:$0xff]
    %v158 = vld [vmem:[%s144 + $0x68] sm:$0xff]
    %v159 = vld [vmem:[%s144 + $0x70] sm:$0xff]
    %v160 = vld [vmem:[%s144 + $0x78] sm:$0xff]
    %v161 = vlaneseq
    %v162 = vshrl.u32 %v161, 7
    %v163 = vsub.s32 1, %v162
    %v164 = vrot.slane %v53, %v163
    %165 = vmatprep.subr.mxu0 0.0
    %166 = vmatpush1.msra.mxu0 %v160
    %167 = vmatprep.subr.mxu0 0.0
    %168 = vmatpush1.msra.mxu0 %v159
    %169 = vmatprep.subr.mxu0 0.0
    %170 = vmatpush1.msra.mxu0 %v158
    %171 = vmatprep.subr.mxu0 0.0
    %172 = vmatpush1.msra.mxu0 %v157
    %173 = vmatprep.subr.mxu0 0.0
    %174 = vmatpush1.msra.mxu0 %v156
    %175 = vmatprep.subr.mxu0 0.0
    %176 = vmatpush1.msra.mxu0 %v155
    %177 = vmatprep.subr.mxu0 0.0
    %178 = vmatpush1.msra.mxu0 %v154
    %179 = vmatprep.subr.mxu0 0.0
    %180 = vmatpush1.msra.mxu0 %v153
    %181 = vmatprep.subr.mxu0 0.0
    %182 = vmatpush1.msra.mxu0 %v152
    %183 = vmatprep.subr.mxu0 0.0
    %184 = vmatpush1.msra.mxu0 %v151
    %185 = vmatprep.subr.mxu0 0.0
    %186 = vmatpush1.msra.mxu0 %v150
    %187 = vmatprep.subr.mxu0 0.0
    %188 = vmatpush1.msra.mxu0 %v149
    %189 = vmatprep.subr.mxu0 0.0
    %190 = vmatpush1.msra.mxu0 %v148
    %191 = vmatprep.subr.mxu0 0.0
    %192 = vmatpush1.msra.mxu0 %v147
    %193 = vmatprep.subr.mxu0 0.0
    %194 = vmatpush1.msra.mxu0 %v146
    %195 = vmatprep.subr.mxu0 0.0
    %196 = vmatpush1.msra.mxu0 %v145
    %197 = vmatprep.subr.mxu0 0.0
    %198 = vmatpush2.msra.mxu0 0.0
    %199 = vmatprep.subr.mxu0 0.0
    %200 = vmatpush2.msra.mxu0 0.0
    %201 = vmatprep.subr.mxu0 0.0
    %202 = vmatpush2.msra.mxu0 0.0
    %203 = vmatprep.subr.mxu0 0.0
    %204 = vmatpush2.msra.mxu0 0.0
    %205 = vmatprep.subr.mxu0 0.0
    %206 = vmatpush2.msra.mxu0 0.0
    %207 = vmatprep.subr.mxu0 0.0
    %208 = vmatpush2.msra.mxu0 0.0
    %209 = vmatprep.subr.mxu0 0.0
    %210 = vmatpush2.msra.mxu0 0.0
    %211 = vmatprep.subr.mxu0 0.0
    %212 = vmatpush2.msra.mxu0 0.0
    %213 = vmatprep.subr.mxu0 0.0
    %214 = vmatpush2.msra.mxu0 0.0
    %215 = vmatprep.subr.mxu0 0.0
    %216 = vmatpush2.msra.mxu0 0.0
    %217 = vmatprep.subr.mxu0 0.0
    %218 = vmatpush2.msra.mxu0 0.0
    %219 = vmatprep.subr.mxu0 0.0
    %220 = vmatpush2.msra.mxu0 0.0
    %221 = vmatprep.subr.mxu0 0.0
    %222 = vmatpush2.msra.mxu0 0.0
    %223 = vmatprep.subr.mxu0 0.0
    %224 = vmatpush2.msra.mxu0 0.0
    %225 = vmatprep.subr.mxu0 0.0
    %226 = vmatpush2.msra.mxu0 0.0
    %227 = vmatprep.subr.mxu0 0.0
    %228 = vmatpush2.msra.mxu0 0.0
    %229 = vmatprep.mubr.f32.mxu0 0.0
    %230 = vmatmul.mubr.f32.gmra.mxu0 %v141
    %v231 = vpop.f32.mrf.mxu0
    %v232 = vadd.f32 %v164, %v231
    %v233 = vpop.f32.mrf.mxu0
    %234 = vdwg.mxu0
    %v235 = vmax.f32 %v232, 0.0
    %s236 = scalar_lea.vmem [#allocation5], 256
    %v237 = vld [vmem:[%s236] sm:$0xff]
    %v238 = vld [vmem:[%s236 + $0x8] sm:$0xff]
    %v239 = vld [vmem:[%s236 + $0x10] sm:$0xff]
    %v240 = vld [vmem:[%s236 + $0x18] sm:$0xff]
    %v241 = vld [vmem:[%s236 + $0x20] sm:$0xff]
    %v242 = vld [vmem:[%s236 + $0x28] sm:$0xff]
    %v243 = vld [vmem:[%s236 + $0x30] sm:$0xff]
    %v244 = vld [vmem:[%s236 + $0x38] sm:$0xff]
    %v245 = vld [vmem:[%s236 + $0x40] sm:$0xff]
    %v246 = vld [vmem:[%s236 + $0x48] sm:$0xff]
    %v247 = vld [vmem:[%s236 + $0x50] sm:$0xff]
    %v248 = vld [vmem:[%s236 + $0x58] sm:$0xff]
    %v249 = vld [vmem:[%s236 + $0x60] sm:$0xff]
    %v250 = vld [vmem:[%s236 + $0x68] sm:$0xff]
    %v251 = vld [vmem:[%s236 + $0x70] sm:$0xff]
    %v252 = vld [vmem:[%s236 + $0x78] sm:$0xff]
    %v253 = vlaneseq
    %v254 = vshrl.u32 %v253, 7
    %v255 = vsub.s32 2, %v254
    %v256 = vrot.slane %v53, %v255
    %257 = vmatprep.subr.mxu0 0.0
    %258 = vmatpush1.msra.mxu0 %v252
    %259 = vmatprep.subr.mxu0 0.0
    %260 = vmatpush1.msra.mxu0 %v251
    %261 = vmatprep.subr.mxu0 0.0
    %262 = vmatpush1.msra.mxu0 %v250
    %263 = vmatprep.subr.mxu0 0.0
    %264 = vmatpush1.msra.mxu0 %v249
    %265 = vmatprep.subr.mxu0 0.0
    %266 = vmatpush1.msra.mxu0 %v248
    %267 = vmatprep.subr.mxu0 0.0
    %268 = vmatpush1.msra.mxu0 %v247
    %269 = vmatprep.subr.mxu0 0.0
    %270 = vmatpush1.msra.mxu0 %v246
    %271 = vmatprep.subr.mxu0 0.0
    %272 = vmatpush1.msra.mxu0 %v245
    %273 = vmatprep.subr.mxu0 0.0
    %274 = vmatpush1.msra.mxu0 %v244
    %275 = vmatprep.subr.mxu0 0.0
    %276 = vmatpush1.msra.mxu0 %v243
    %277 = vmatprep.subr.mxu0 0.0
    %278 = vmatpush1.msra.mxu0 %v242
    %279 = vmatprep.subr.mxu0 0.0
    %280 = vmatpush1.msra.mxu0 %v241
    %281 = vmatprep.subr.mxu0 0.0
    %282 = vmatpush1.msra.mxu0 %v240
    %283 = vmatprep.subr.mxu0 0.0
    %284 = vmatpush1.msra.mxu0 %v239
    %285 = vmatprep.subr.mxu0 0.0
    %286 = vmatpush1.msra.mxu0 %v238
    %287 = vmatprep.subr.mxu0 0.0
    %288 = vmatpush1.msra.mxu0 %v237
    %289 = vmatprep.subr.mxu0 0.0
    %290 = vmatpush2.msra.mxu0 0.0
    %291 = vmatprep.subr.mxu0 0.0
    %292 = vmatpush2.msra.mxu0 0.0
    %293 = vmatprep.subr.mxu0 0.0
    %294 = vmatpush2.msra.mxu0 0.0
    %295 = vmatprep.subr.mxu0 0.0
    %296 = vmatpush2.msra.mxu0 0.0
    %297 = vmatprep.subr.mxu0 0.0
    %298 = vmatpush2.msra.mxu0 0.0
    %299 = vmatprep.subr.mxu0 0.0
    %300 = vmatpush2.msra.mxu0 0.0
    %301 = vmatprep.subr.mxu0 0.0
    %302 = vmatpush2.msra.mxu0 0.0
    %303 = vmatprep.subr.mxu0 0.0
    %304 = vmatpush2.msra.mxu0 0.0
    %305 = vmatprep.subr.mxu0 0.0
    %306 = vmatpush2.msra.mxu0 0.0
    %307 = vmatprep.subr.mxu0 0.0
    %308 = vmatpush2.msra.mxu0 0.0
    %309 = vmatprep.subr.mxu0 0.0
    %310 = vmatpush2.msra.mxu0 0.0
    %311 = vmatprep.subr.mxu0 0.0
    %312 = vmatpush2.msra.mxu0 0.0
    %313 = vmatprep.subr.mxu0 0.0
    %314 = vmatpush2.msra.mxu0 0.0
    %315 = vmatprep.subr.mxu0 0.0
    %316 = vmatpush2.msra.mxu0 0.0
    %317 = vmatprep.subr.mxu0 0.0
    %318 = vmatpush2.msra.mxu0 0.0
    %319 = vmatprep.subr.mxu0 0.0
    %320 = vmatpush2.msra.mxu0 0.0
    %321 = vmatprep.mubr.f32.mxu0 0.0
    %322 = vmatmul.mubr.f32.gmra.mxu0 %v235
    %v323 = vpop.f32.mrf.mxu0
    %v324 = vadd.f32 %v256, %v323
    %v325 = vpop.f32.mrf.mxu0
    %326 = vdwg.mxu0
    %v327 = vlaneseq
    %v328 = vand.u32 %v327, 127
    %vm329 = vcmp.lt.s32.totalorder %v328, 4
    %v330 = vsel %vm329, %v324, 0.0
    %331 = vadd.xlane.f32.xlu0 %v330
    %v332 = vpop.xlane.xlu0 %331
    %v333 = vmul.f32 %v332, 0.25
    %vm334 = vcmp.eq.s32.totalorder %v328, 4
    %v335 = vsel %vm334, %v324, 0.0
    %336 = vadd.xlane.f32.xlu0 %v335
    %v337 = vpop.xlane.xlu0 %336
    %v338 = vsub.f32 %v330, %v333
    %v339 = vadd.f32 %v337, %v338
    %v340 = vsel %vm329, %v339, 0.0
    %341 = vst [vmem:[#allocation8] sm:$0xff] %v340
    // Predicated region
    $region26: #{tpu_custom_call.1} parent=1 // pred_check
      _
    $region27: #{tpu_custom_call.1} parent=1 // pred_check_branch
      %343 = sbr.rel (0) target = $region29
    $region28: #{tpu_custom_call.1} parent=1 // pred_region
      %s345 = ssub.s32 128, 128
      %346 = vsyncadd [#allocation4], %s345
      %s348 = sshll.u32 [#allocation8], 4
      %s349 = int_to_ptr.vmem [resolvable:$true] %s348
      %351 = dma.vmem_to_hbm [thread:$0]  %s349, 128, %s3, [#allocation4]
    $region29: #{tpu_custom_call.1} parent=1 // pred_fallthru
      _
    // Predicated region
    $region30: #{tpu_custom_call.1} parent=1 // pred_check
      _
    $region31: #{tpu_custom_call.1} parent=1 // pred_check_branch
      %353 = sbr.rel (0) target = $region33
    $region32: #{tpu_custom_call.1} parent=1 // pred_region
      %354 = dma.done [#allocation4], 128
    $region33: #{tpu_custom_call.1} parent=1 // pred_fallthru
      _
    %355 = vsyncpa [#allocation3], 1
    %356 = vsyncpa [#allocation6], 1
    %357 = vsyncpa [#allocation4], 1

</llo_original>
